<compile_context>
chip_gen: v6e
topology: v6e:2x2x1
jax: 0.10.0
libtpu: 0.0.40
codegen_flags: <defaults>
</compile_context>

<pallas_src>
import functools

import jax
import jax.numpy as jnp
from jax import lax
from jax.experimental import pallas as pl
from jax.experimental.pallas import tpu as pltpu


def _pool_stats_kernel(x_ref, o_ref, sum_ref, ssd_ref, xw, tw, *,
                       pool_type, K, s, p, H, W, Ho, Wo):
    """Pool one (n, c) plane + emit per-plane BN partial stats.

    x_ref:   (1, 1, H, W)    input plane (NCHW block)
    o_ref:   (1, 1, Ho, Wo)  pooled plane
    sum_ref: (1, 1, 1, 1)    sum over the pooled plane
    ssd_ref: (1, 1, 1, 1)    sum of squared deviations about the plane mean
    xw:      (H, W + 2p)     W-padded scratch (only used when p > 0)
    tw:      (H + 2p, Wo)    H-padded scratch holding the W-pooled intermediate
    """
    pad_val = -jnp.inf if pool_type == "max" else 0.0
    Wf = Wo if s == 1 else (Wo - 1) * s + 1

    # ---- W pass: K taps at stride-1 lane offsets -------------------------------------
    if p > 0:
        # Halo fill (2*p columns) + one interior copy; no full-plane fill.
        xw[:, 0:p] = jnp.full((H, p), pad_val, jnp.float32)
        xw[:, p + W:p + W + p] = jnp.full((H, p), pad_val, jnp.float32)
        xw[:, p:p + W] = x_ref[0, 0].astype(jnp.float32)

        def wtap(kw):
            return xw[:, kw:kw + Wf]
    else:
        def wtap(kw):
            return x_ref[0, 0, :, kw:kw + Wf].astype(jnp.float32)

    t = wtap(0)
    for kw in range(1, K):
        tap = wtap(kw)
        t = jnp.maximum(t, tap) if pool_type == "max" else t + tap

    if s > 1:
        # Exact one-hot column selection t[:, wo] = t_full[:, wo*s] on the (idle) MXU,
        # avoiding lane-strided loads.  Selection with 0/1 weights is bit-exact.
        j = lax.broadcasted_iota(jnp.int32, (Wf, Wo), 0)
        wo = lax.broadcasted_iota(jnp.int32, (Wf, Wo), 1)
        sel = (j == wo * s).astype(jnp.float32)
        t = jnp.dot(t, sel, precision=lax.Precision.HIGHEST,
                    preferred_element_type=jnp.float32)

    # ---- H pass: K taps along sublanes (strided reads for s > 1) ---------------------
    if p > 0:
        tw[0:p, :] = jnp.full((p, Wo), pad_val, jnp.float32)
        tw[p + H:p + H + p, :] = jnp.full((p, Wo), pad_val, jnp.float32)
    tw[p:p + H, :] = t

    def htap(kh):
        return tw[kh:kh + Ho, :] if s == 1 else tw[pl.ds(kh, Ho, s), :]

    acc = htap(0)
    for kh in range(1, K):
        tap = htap(kh)
        acc = jnp.maximum(acc, tap) if pool_type == "max" else acc + tap

    if pool_type == "avg":
        # count_include_pad=False divisor, computed in-kernel (no lane-padded side input).
        oh = lax.broadcasted_iota(jnp.int32, (Ho, Wo), 0)
        ow = lax.broadcasted_iota(jnp.int32, (Ho, Wo), 1)
        cnt_h = jnp.minimum(oh * s - p + K, H) - jnp.maximum(oh * s - p, 0)
        cnt_w = jnp.minimum(ow * s - p + K, W) - jnp.maximum(ow * s - p, 0)
        acc = acc / (cnt_h * cnt_w).astype(jnp.float32)

    o_ref[0, 0] = acc.astype(o_ref.dtype)

    # ---- per-plane BN partial stats (mean-shifted for numerical robustness) ----------
    s1 = jnp.sum(jnp.sum(acc, axis=0, keepdims=True), axis=1, keepdims=True)     # (1, 1)
    d = acc - s1 * (1.0 / float(Ho * Wo))
    s2 = jnp.sum(jnp.sum(d * d, axis=0, keepdims=True), axis=1, keepdims=True)   # (1, 1)
    sum_ref[0, 0] = s1
    ssd_ref[0, 0] = s2


def _bn_apply_kernel(x_ref, scale_ref, shift_ref, o_ref):
    """Per-row affine y = x * scale + shift on a lane-dense (rows, Ho*Wo) view."""
    o_ref[...] = x_ref[...] * scale_ref[...] + shift_ref[...]


def _vmem_limit_bytes():
    """~75% of per-core VMEM, capped at 64 MiB (=> ~48 MiB on v7x, 64 MiB on v5e/v6e)."""
    try:
        cap = int(pltpu.get_tpu_info().vmem_capacity_bytes)
    except Exception:
        cap = 64 * 1024 * 1024
    return int(min(cap * 3 // 4, 64 * 1024 * 1024))


def pool_bn(x, gamma, beta, *, pool_type, kernel_size, stride, padding, eps=1e-5):
    """PoolBN forward in NCHW (PyTorch training-mode BN: biased batch stats over N, H, W)."""
    pool_type = pool_type.lower()
    if pool_type not in ("max", "avg"):
        raise ValueError(pool_type)
    N, C, H, W = x.shape
    K, s, p = kernel_size, stride, padding
    Ho = (H + 2 * p - K) // s + 1
    Wo = (W + 2 * p - K) // s + 1
    vmem_limit = _vmem_limit_bytes()

    pool_cost = pl.CostEstimate(
        flops=int(N * C * ((K - 1) * (H * Wo + Ho * Wo) + 6 * Ho * Wo)),
        transcendentals=0,
        bytes_accessed=int(4 * (N * C * H * W + N * C * Ho * Wo + 4 * N * C)),
    )
    pooled, psum, pssd = pl.pallas_call(
        functools.partial(_pool_stats_kernel, pool_type=pool_type, K=K, s=s, p=p,
                          H=H, W=W, Ho=Ho, Wo=Wo),
        out_shape=(jax.ShapeDtypeStruct((N, C, Ho, Wo), jnp.float32),
                   jax.ShapeDtypeStruct((N, C, 1, 1), jnp.float32),
                   jax.ShapeDtypeStruct((N, C, 1, 1), jnp.float32)),
        grid=(N, C),
        in_specs=[pl.BlockSpec((1, 1, H, W), lambda n, c: (n, c, 0, 0))],
        out_specs=(pl.BlockSpec((1, 1, Ho, Wo), lambda n, c: (n, c, 0, 0)),
                   pl.BlockSpec((1, 1, 1, 1), lambda n, c: (n, c, 0, 0)),
                   pl.BlockSpec((1, 1, 1, 1), lambda n, c: (n, c, 0, 0))),
        scratch_shapes=[pltpu.VMEM((H, W + 2 * p), jnp.float32),
                        pltpu.VMEM((H + 2 * p, Wo), jnp.float32)],
        compiler_params=pltpu.CompilerParams(
            dimension_semantics=("parallel", "parallel"),
            vmem_limit_bytes=vmem_limit),
        cost_estimate=pool_cost,
    )(x)

    # Tiny glue (shapes (N, C) / (C,)): combine per-plane partial stats -> scale/shift.
    M = float(Ho * Wo)
    s1 = psum[:, :, 0, 0]                                         # (N, C) plane sums
    s2 = pssd[:, :, 0, 0]                                         # (N, C) plane SSDs
    mean_c = jnp.sum(s1, axis=0) / (N * M)                        # (C,)
    mu_p = s1 / M                                                 # (N, C)
    var_c = (jnp.sum(s2, axis=0)
             + M * jnp.sum(jnp.square(mu_p - mean_c[None, :]), axis=0)) / (N * M)
    scale = gamma.astype(jnp.float32) / jnp.sqrt(var_c + eps)     # (C,)
    shift = beta.astype(jnp.float32) - mean_c * scale             # (C,)

    # Lane-dense, in-place BN apply on the free (N*C, Ho*Wo) view; per-row scale/shift.
    R, L = N * C, Ho * Wo
    pooled_flat = pooled.reshape(R, L)
    scale_col = jnp.tile(scale, N).reshape(R, 1)
    shift_col = jnp.tile(shift, N).reshape(R, 1)

    # Row tile sized from the VMEM budget: ~4 live row-tile buffers + 4 lane-padded columns.
    per_row_bytes = 16 * L + 2048
    tr = max(8, (((vmem_limit * 6) // 10) // per_row_bytes) // 8 * 8)
    TR = int(min(R, tr))

    bn_cost = pl.CostEstimate(flops=int(2 * R * L), transcendentals=0,
                              bytes_accessed=int(4 * (2 * R * L + 2 * R)))
    out_flat = pl.pallas_call(
        _bn_apply_kernel,
        out_shape=jax.ShapeDtypeStruct((R, L), jnp.float32),
        grid=(pl.cdiv(R, TR),),
        in_specs=[pl.BlockSpec((TR, L), lambda i: (i, 0)),
                  pl.BlockSpec((TR, 1), lambda i: (i, 0)),
                  pl.BlockSpec((TR, 1), lambda i: (i, 0))],
        out_specs=pl.BlockSpec((TR, L), lambda i: (i, 0)),
        input_output_aliases={0: 0},
        compiler_params=pltpu.CompilerParams(
            dimension_semantics=("parallel",), vmem_limit_bytes=vmem_limit),
        cost_estimate=bn_cost,
    )(pooled_flat, scale_col, shift_col)

    return out_flat.reshape(N, C, Ho, Wo).astype(x.dtype)


def _ref_pool_bn(x, gamma, beta, pool_type, K, s, p, eps=1e-5):
    """Pure-JAX reference (NCHW)."""
    pad = [(0, 0), (0, 0), (p, p), (p, p)]
    if pool_type == "max":
        pooled = lax.reduce_window(x, -jnp.inf, lax.max, (1, 1, K, K), (1, 1, s, s), pad)
    else:
        ssum = lax.reduce_window(x, 0.0, lax.add, (1, 1, K, K), (1, 1, s, s), pad)
        cnt = lax.reduce_window(jnp.ones_like(x), 0.0, lax.add,
                                (1, 1, K, K), (1, 1, s, s), pad)
        pooled = ssum / cnt
    mean = pooled.mean(axis=(0, 2, 3), keepdims=True)
    var = jnp.square(pooled - mean).mean(axis=(0, 2, 3), keepdims=True)
    g = gamma.reshape(1, -1, 1, 1)
    b = beta.reshape(1, -1, 1, 1)
    return (pooled - mean) / jnp.sqrt(var + eps) * g + b


if __name__ == "__main__":
    key = jax.random.PRNGKey(0)
    kx, kg, kb = jax.random.split(key, 3)

    N, C, H, W = 2, 4, 16, 16
    K, stride, padding = 3, 1, 1

    x = jax.random.normal(kx, (N, C, H, W), jnp.float32)            # NCHW like PyTorch
    gamma = 1.0 + 0.1 * jax.random.normal(kg, (C,), jnp.float32)    # BN affine weight
    beta = 0.1 * jax.random.normal(kb, (C,), jnp.float32)           # BN affine bias

    for pool_type in ("max", "avg"):
        fn = jax.jit(functools.partial(pool_bn, pool_type=pool_type,
                                       kernel_size=K, stride=stride, padding=padding))
        out = jax.block_until_ready(fn(x, gamma, beta))
        assert out.shape == (N, C, H, W), out.shape

        ref = _ref_pool_bn(x, gamma, beta, pool_type, K, stride, padding)
        err = float(jnp.max(jnp.abs(out - ref)))
        assert err < 1e-3, f"{pool_type}: max abs err {err}"

    print("KERNEL_OK")
</pallas_src>

<mosaic_0001>
module attributes {stable_mosaic.version = 11 : i64} {
  func.func @_pool_stats_kernel(%arg0: i32, %arg1: i32, %arg2: memref<1x1x16x16xf32, #tpu.memory_space<vmem>>, %arg3: memref<1x1x16x16xf32, #tpu.memory_space<vmem>>, %arg4: memref<1x1x1x1xf32, #tpu.memory_space<vmem>>, %arg5: memref<1x1x1x1xf32, #tpu.memory_space<vmem>>, %arg6: memref<16x18xf32, #tpu.memory_space<vmem>>, %arg7: memref<18x16xf32, #tpu.memory_space<vmem>>) attributes {dimension_semantics = [#tpu.dimension_semantics<parallel>, #tpu.dimension_semantics<parallel>], iteration_bounds = array<i64: 2, 4>, scalar_prefetch = 0 : i64, scratch_operands = 2 : i64, tpu.core_type = #tpu.core_type<tc>, window_params = [{transform_indices = @transform_0, window_bounds = array<i64: 1, 1, 16, 16>}, {transform_indices = @transform_1, window_bounds = array<i64: 1, 1, 16, 16>}, {transform_indices = @transform_2, window_bounds = array<i64: 1, 1, 1, 1>}, {transform_indices = @transform_3, window_bounds = array<i64: 1, 1, 1, 1>}]} {
    %cst = arith.constant 0xFF800000 : f32
    %0 = vector.broadcast %cst : f32 to vector<16x1xf32>
    %c0 = arith.constant 0 : index
    %c0_0 = arith.constant 0 : index
    %1 = vector.load %arg6[%c0, %c0_0] : memref<16x18xf32, #tpu.memory_space<vmem>>, vector<16x1xf32>
    tpu.vector_store %arg6[%c0, %c0_0], %0 {strides = array<i32>} : memref<16x18xf32, #tpu.memory_space<vmem>>, vector<16x1xf32>,
    %cst_1 = arith.constant 0xFF800000 : f32
    %2 = vector.broadcast %cst_1 : f32 to vector<16x1xf32>
    %c0_2 = arith.constant 0 : index
    %c17 = arith.constant 17 : index
    %3 = vector.load %arg6[%c0_2, %c17] : memref<16x18xf32, #tpu.memory_space<vmem>>, vector<16x1xf32>
    tpu.vector_store %arg6[%c0_2, %c17], %2 {strides = array<i32>} : memref<16x18xf32, #tpu.memory_space<vmem>>, vector<16x1xf32>,
    %c0_3 = arith.constant 0 : index
    %c0_4 = arith.constant 0 : index
    %c0_5 = arith.constant 0 : index
    %c0_6 = arith.constant 0 : index
    %4 = vector.load %arg2[%c0_3, %c0_4, %c0_5, %c0_6] : memref<1x1x16x16xf32, #tpu.memory_space<vmem>>, vector<1x1x16x16xf32>
    %5 = vector.shape_cast %4 : vector<1x1x16x16xf32> to vector<16x16xf32>
    %c0_7 = arith.constant 0 : index
    %c1 = arith.constant 1 : index
    %6 = vector.load %arg6[%c0_7, %c1] : memref<16x18xf32, #tpu.memory_space<vmem>>, vector<16x16xf32>
    tpu.vector_store %arg6[%c0_7, %c1], %5 {strides = array<i32>} : memref<16x18xf32, #tpu.memory_space<vmem>>, vector<16x16xf32>,
    %c0_8 = arith.constant 0 : index
    %c0_9 = arith.constant 0 : index
    %7 = vector.load %arg6[%c0_8, %c0_9] : memref<16x18xf32, #tpu.memory_space<vmem>>, vector<16x16xf32>
    %c0_10 = arith.constant 0 : index
    %c1_11 = arith.constant 1 : index
    %8 = vector.load %arg6[%c0_10, %c1_11] : memref<16x18xf32, #tpu.memory_space<vmem>>, vector<16x16xf32>
    %9 = arith.maximumf %7, %8 : vector<16x16xf32>
    %c0_12 = arith.constant 0 : index
    %c2 = arith.constant 2 : index
    %10 = vector.load %arg6[%c0_12, %c2] : memref<16x18xf32, #tpu.memory_space<vmem>>, vector<16x16xf32>
    %11 = arith.maximumf %9, %10 : vector<16x16xf32>
    %cst_13 = arith.constant 0xFF800000 : f32
    %12 = vector.broadcast %cst_13 : f32 to vector<1x16xf32>
    %c0_14 = arith.constant 0 : index
    %c0_15 = arith.constant 0 : index
    %13 = vector.load %arg7[%c0_14, %c0_15] : memref<18x16xf32, #tpu.memory_space<vmem>>, vector<1x16xf32>
    tpu.vector_store %arg7[%c0_14, %c0_15], %12 {strides = array<i32>} : memref<18x16xf32, #tpu.memory_space<vmem>>, vector<1x16xf32>,
    %cst_16 = arith.constant 0xFF800000 : f32
    %14 = vector.broadcast %cst_16 : f32 to vector<1x16xf32>
    %c17_17 = arith.constant 17 : index
    %c0_18 = arith.constant 0 : index
    %15 = vector.load %arg7[%c17_17, %c0_18] : memref<18x16xf32, #tpu.memory_space<vmem>>, vector<1x16xf32>
    tpu.vector_store %arg7[%c17_17, %c0_18], %14 {strides = array<i32>} : memref<18x16xf32, #tpu.memory_space<vmem>>, vector<1x16xf32>,
    %c1_19 = arith.constant 1 : index
    %c0_20 = arith.constant 0 : index
    %16 = vector.load %arg7[%c1_19, %c0_20] : memref<18x16xf32, #tpu.memory_space<vmem>>, vector<16x16xf32>
    tpu.vector_store %arg7[%c1_19, %c0_20], %11 {strides = array<i32>} : memref<18x16xf32, #tpu.memory_space<vmem>>, vector<16x16xf32>,
    %c0_21 = arith.constant 0 : index
    %c0_22 = arith.constant 0 : index
    %17 = vector.load %arg7[%c0_21, %c0_22] : memref<18x16xf32, #tpu.memory_space<vmem>>, vector<16x16xf32>
    %c1_23 = arith.constant 1 : index
    %c0_24 = arith.constant 0 : index
    %18 = vector.load %arg7[%c1_23, %c0_24] : memref<18x16xf32, #tpu.memory_space<vmem>>, vector<16x16xf32>
    %19 = arith.maximumf %17, %18 : vector<16x16xf32>
    %c2_25 = arith.constant 2 : index
    %c0_26 = arith.constant 0 : index
    %20 = vector.load %arg7[%c2_25, %c0_26] : memref<18x16xf32, #tpu.memory_space<vmem>>, vector<16x16xf32>
    %21 = arith.maximumf %19, %20 : vector<16x16xf32>
    %c0_27 = arith.constant 0 : index
    %c0_28 = arith.constant 0 : index
    %c0_29 = arith.constant 0 : index
    %c0_30 = arith.constant 0 : index
    %22 = vector.load %arg3[%c0_27, %c0_28, %c0_29, %c0_30] : memref<1x1x16x16xf32, #tpu.memory_space<vmem>>, vector<1x1x16x16xf32>
    %23 = vector.shape_cast %22 : vector<1x1x16x16xf32> to vector<16x16xf32>
    %24 = vector.shape_cast %21 : vector<16x16xf32> to vector<1x1x16x16xf32>
    tpu.vector_store %arg3[%c0_27, %c0_28, %c0_29, %c0_30], %24 {strides = array<i32>} : memref<1x1x16x16xf32, #tpu.memory_space<vmem>>, vector<1x1x16x16xf32>,
    %cst_31 = arith.constant dense<0.000000e+00> : vector<16xf32>
    %25 = vector.multi_reduction <add>, %21, %cst_31 [0] : vector<16x16xf32> to vector<16xf32>
    %26 = vector.shape_cast %25 : vector<16xf32> to vector<1x16xf32>
    %cst_32 = arith.constant dense<0.000000e+00> : vector<1xf32>
    %27 = vector.multi_reduction <add>, %26, %cst_32 [1] : vector<1x16xf32> to vector<1xf32>
    %28 = vector.shape_cast %27 : vector<1xf32> to vector<1x1xf32>
    %cst_33 = arith.constant 3.906250e-03 : f32
    %29 = vector.broadcast %cst_33 : f32 to vector<1x1xf32>
    %30 = arith.mulf %28, %29 : vector<1x1xf32>
    %31 = vector.broadcast %30 : vector<1x1xf32> to vector<16x16xf32>
    %32 = arith.subf %21, %31 : vector<16x16xf32>
    %33 = arith.mulf %32, %32 : vector<16x16xf32>
    %cst_34 = arith.constant dense<0.000000e+00> : vector<16xf32>
    %34 = vector.multi_reduction <add>, %33, %cst_34 [0] : vector<16x16xf32> to vector<16xf32>
    %35 = vector.shape_cast %34 : vector<16xf32> to vector<1x16xf32>
    %cst_35 = arith.constant dense<0.000000e+00> : vector<1xf32>
    %36 = vector.multi_reduction <add>, %35, %cst_35 [1] : vector<1x16xf32> to vector<1xf32>
    %37 = vector.shape_cast %36 : vector<1xf32> to vector<1x1xf32>
    %c0_36 = arith.constant 0 : index
    %c0_37 = arith.constant 0 : index
    %c0_38 = arith.constant 0 : index
    %c0_39 = arith.constant 0 : index
    %38 = vector.load %arg4[%c0_36, %c0_37, %c0_38, %c0_39] : memref<1x1x1x1xf32, #tpu.memory_space<vmem>>, vector<1x1x1x1xf32>
    %39 = vector.shape_cast %38 : vector<1x1x1x1xf32> to vector<1x1xf32>
    %40 = vector.shape_cast %28 : vector<1x1xf32> to vector<1x1x1x1xf32>
    tpu.vector_store %arg4[%c0_36, %c0_37, %c0_38, %c0_39], %40 {strides = array<i32>} : memref<1x1x1x1xf32, #tpu.memory_space<vmem>>, vector<1x1x1x1xf32>,
    %c0_40 = arith.constant 0 : index
    %c0_41 = arith.constant 0 : index
    %c0_42 = arith.constant 0 : index
    %c0_43 = arith.constant 0 : index
    %41 = vector.load %arg5[%c0_40, %c0_41, %c0_42, %c0_43] : memref<1x1x1x1xf32, #tpu.memory_space<vmem>>, vector<1x1x1x1xf32>
    %42 = vector.shape_cast %41 : vector<1x1x1x1xf32> to vector<1x1xf32>
    %43 = vector.shape_cast %37 : vector<1x1xf32> to vector<1x1x1x1xf32>
    tpu.vector_store %arg5[%c0_40, %c0_41, %c0_42, %c0_43], %43 {strides = array<i32>} : memref<1x1x1x1xf32, #tpu.memory_space<vmem>>, vector<1x1x1x1xf32>,
    return
  }
  func.func @transform_0(%arg0: i32, %arg1: i32) -> (i32, i32, i32, i32) {
    %c0_i32 = arith.constant 0 : i32
    %c0_i32_0 = arith.constant 0 : i32
    %c0_i32_1 = arith.constant 0 : i32
    return %arg0, %arg1, %c0_i32, %c0_i32_0 : i32, i32, i32, i32
  }
  func.func @transform_1(%arg0: i32, %arg1: i32) -> (i32, i32, i32, i32) {
    %c0_i32 = arith.constant 0 : i32
    %c0_i32_0 = arith.constant 0 : i32
    %c0_i32_1 = arith.constant 0 : i32
    return %arg0, %arg1, %c0_i32, %c0_i32_0 : i32, i32, i32, i32
  }
  func.func @transform_2(%arg0: i32, %arg1: i32) -> (i32, i32, i32, i32) {
    %c0_i32 = arith.constant 0 : i32
    %c0_i32_0 = arith.constant 0 : i32
    %c0_i32_1 = arith.constant 0 : i32
    return %arg0, %arg1, %c0_i32, %c0_i32_0 : i32, i32, i32, i32
  }
  func.func @transform_3(%arg0: i32, %arg1: i32) -> (i32, i32, i32, i32) {
    %c0_i32 = arith.constant 0 : i32
    %c0_i32_0 = arith.constant 0 : i32
    %c0_i32_1 = arith.constant 0 : i32
    return %arg0, %arg1, %c0_i32, %c0_i32_0 : i32, i32, i32, i32
  }
}

module attributes {stable_mosaic.version = 11 : i64} {
  func.func @_bn_apply_kernel(%arg0: i32, %arg1: memref<8x256xf32, #tpu.memory_space<vmem>>, %arg2: memref<8x1xf32, #tpu.memory_space<vmem>>, %arg3: memref<8x1xf32, #tpu.memory_space<vmem>>, %arg4: memref<8x256xf32, #tpu.memory_space<vmem>>) attributes {dimension_semantics = [#tpu.dimension_semantics<parallel>], iteration_bounds = array<i64: 1>, scalar_prefetch = 0 : i64, scratch_operands = 0 : i64, tpu.core_type = #tpu.core_type<tc>, window_params = [{transform_indices = @transform_0, window_bounds = array<i64: 8, 256>}, {transform_indices = @transform_1, window_bounds = array<i64: 8, 1>}, {transform_indices = @transform_2, window_bounds = array<i64: 8, 1>}, {transform_indices = @transform_3, window_bounds = array<i64: 8, 256>}]} {
    %c0 = arith.constant 0 : index
    %c0_0 = arith.constant 0 : index
    %0 = vector.load %arg1[%c0, %c0_0] : memref<8x256xf32, #tpu.memory_space<vmem>>, vector<8x256xf32>
    %c0_1 = arith.constant 0 : index
    %c0_2 = arith.constant 0 : index
    %1 = vector.load %arg2[%c0_1, %c0_2] : memref<8x1xf32, #tpu.memory_space<vmem>>, vector<8x1xf32>
    %2 = vector.broadcast %1 : vector<8x1xf32> to vector<8x256xf32>
    %3 = arith.mulf %0, %2 : vector<8x256xf32>
    %c0_3 = arith.constant 0 : index
    %c0_4 = arith.constant 0 : index
    %4 = vector.load %arg3[%c0_3, %c0_4] : memref<8x1xf32, #tpu.memory_space<vmem>>, vector<8x1xf32>
    %5 = vector.broadcast %4 : vector<8x1xf32> to vector<8x256xf32>
    %6 = arith.addf %3, %5 : vector<8x256xf32>
    %c0_5 = arith.constant 0 : index
    %c0_6 = arith.constant 0 : index
    %7 = vector.load %arg4[%c0_5, %c0_6] : memref<8x256xf32, #tpu.memory_space<vmem>>, vector<8x256xf32>
    tpu.vector_store %arg4[%c0_5, %c0_6], %6 {strides = array<i32>} : memref<8x256xf32, #tpu.memory_space<vmem>>, vector<8x256xf32>,
    return
  }
  func.func @transform_0(%arg0: i32) -> (i32, i32) {
    %c0_i32 = arith.constant 0 : i32
    %c0_i32_0 = arith.constant 0 : i32
    return %arg0, %c0_i32 : i32, i32
  }
  func.func @transform_1(%arg0: i32) -> (i32, i32) {
    %c0_i32 = arith.constant 0 : i32
    %c0_i32_0 = arith.constant 0 : i32
    return %arg0, %c0_i32 : i32, i32
  }
  func.func @transform_2(%arg0: i32) -> (i32, i32) {
    %c0_i32 = arith.constant 0 : i32
    %c0_i32_0 = arith.constant 0 : i32
    return %arg0, %c0_i32 : i32, i32
  }
  func.func @transform_3(%arg0: i32) -> (i32, i32) {
    %c0_i32 = arith.constant 0 : i32
    %c0_i32_0 = arith.constant 0 : i32
    return %arg0, %c0_i32 : i32, i32
  }
}

</mosaic_0001>

<llo_original>
// kernel: tile.18
$region0: #{tile.18}
  #allocation0 [shape = 's32[1]{0}', space=sflag, size = 0x4, scoped, tag = 'scoped memory for tile.18']
  %s0 = inlined_call_operand.vmem [shape: f32[4], index: 0, kind: input, shape index: {}]
  %s1 = inlined_call_operand.vmem [shape: f32[2,4], index: 1, kind: output, shape index: {}]
  // Predicated region
  $region2: #{tile.18} parent=0 // pred_check
    _
  $region3: #{tile.18} parent=0 // pred_check_branch
    %3 = sbr.rel (0) target = $region5
  $region4: #{tile.18} parent=0 // pred_region
    _
  $region5: #{tile.18} parent=0 // pred_fallthru
    _
  %v4 = vld [vmem:[%s0] ss:$0 sm:$0xff]
  %5 = vst [vmem:[%s1] sm:$0x3] %v4

// kernel: tile.0
$region0: #{tile.0}
  %s0 = inlined_call_operand.vmem [shape: f32[2,4], index: 0, kind: input, shape index: {}]
  %s1 = inlined_call_operand.vmem [shape: f32[8,1], index: 1, kind: output, shape index: {}]
  $region1: #{tile.0} parent=0
    #allocation0 [shape = 'u8[4096]{0}', space=vmem, size = 0x1000, scoped, tag = 'scoped mem for input reshape']
    %s3 = sshll.u32 1, 2
    %s4 = ssub.s32 %s3, 1
    %v5 = vld [vmem:[%s0] sm:%s4]
    %6 = vst [vmem:[#allocation0] sm:%s4] %v5
    %v7 = vld [vmem:[#allocation0] sm:$0x3]
    %vm8 = vcmask 7168
    %9 = vst.msk [vmem:[%s1] ss:$4 sm:$0x3] %vm8, %v7
    %v10 = vld [vmem:[#allocation0] sm:$0x3]
    %11 = vrot.lane.b32.xlu0 %v10, 127
    %v12 = vpop.permute.xlu0 %11
    %vm13 = vcmask 7168
    %s14 = scalar_lea.vmem %s1, 1
    %15 = vst.msk [vmem:[%s14] ss:$4 sm:$0x3] %vm13, %v12
    %v16 = vld [vmem:[#allocation0] sm:$0x3]
    %17 = vrot.lane.b32.xlu0 %v16, 126
    %v18 = vpop.permute.xlu0 %17
    %vm19 = vcmask 7168
    %s20 = scalar_lea.vmem %s1, 2
    %21 = vst.msk [vmem:[%s20] ss:$4 sm:$0x3] %vm19, %v18
    %v22 = vld [vmem:[#allocation0] sm:$0x3]
    %23 = vrot.lane.b32.xlu0 %v22, 125
    %v24 = vpop.permute.xlu0 %23
    %vm25 = vcmask 7168
    %s26 = scalar_lea.vmem %s1, 3
    %27 = vst.msk [vmem:[%s26] ss:$4 sm:$0x3] %vm25, %v24

// kernel: pool_bn.2
$region0: #{pool_bn.2}
  #allocation0 [shape = 'u32[]', space=smem, size = 0x4, offset = 0x4, fixed_abs, tag = 'smem constant byte address 0x4 - core index']
  #allocation1 [shape = 'u32[144,128]{1,0:T(1,128)}', space=vmem, size = 0x12000, scoped, tag = 'internal scratch']
  #allocation2 [shape = 'f32[16,18]{1,0:T(8,128)}', space=vmem, size = 0x2000, scoped, tag = 'scratch operand']
  #allocation3 [shape = 'f32[18,16]{1,0:T(8,128)}', space=vmem, size = 0x3000, scoped, tag = 'scratch operand']
  %s0 = inlined_call_operand.hbm [shape: f32[2,4,16,16], index: 0, kind: input, shape index: {}]
  %s1 = inlined_call_operand.vmem [shape: f32[2,4,16,16], index: 1, kind: output, shape index: {0}]
  %s2 = inlined_call_operand.vmem [shape: f32[2,4,1,1], index: 2, kind: output, shape index: {1}]
  %s3 = inlined_call_operand.vmem [shape: f32[2,4,1,1], index: 3, kind: output, shape index: {2}]
  %4 = xla_tuple %s1, %s2, %s3
  %s5 = sld [smem:[#allocation0]]
  $region57: #{pool_bn.2} parent=0
    _
  %s7 = ssub.s32 1, %s5
  %s8 = scalar_select 0, %s7, %s5
  $region1: #{pool_bn.2} parent=0
    #allocation4 [shape = 'u8[16384]{0}', space=vmem, size = 0x4000, scoped, tag = 'input window, operand 0']
    #allocation5 [shape = 's32[2]{0}', space=sflag, size = 0x8, scoped, tag = 'scoped memory for pool_bn.2']
    %9 = vsyncpa [#allocation5], 0
    %s10 = scalar_lea.sflag [#allocation5], 1
    %11 = vsyncpa %s10, 0
    loop: start=0, step=1, limit=10
    $region2: #{pool_bn.2} parent=1 // loop_pre_header
      _
    $region3: #{pool_bn.2} parent=1 // loop_header
      %s13 = sphi 0, %s17
      %p14 = scmp.ge.s32.totalorder %s13, 10
      %s20 = sphi 0, %s32
      %s21 = sphi 0, %s28
      %s22 = sphi 0, %s20
      %s23 = sphi 0, %s21
      %s24 = sphi 0, %s22
      %s25 = sphi 0, %s23
      %s37 = sphi 0, %s39
      %s40 = sphi 0, %s37
      %s41 = sphi 0, %s40
      %s57 = sphi 0, %s41
      %s65 = sphi 0, %s67
      %s68 = sphi 0, %s65
      %s69 = sphi 0, %s68
      %s85 = sphi 0, %s69
      %s93 = sphi 0, %s95
      %s96 = sphi 0, %s93
      %s97 = sphi 0, %s96
      %s113 = sphi 0, %s97
      %s121 = sphi 0, %s123
      %s124 = sphi 0, %s121
      %s125 = sphi 0, %s124
      %s141 = sphi 0, %s125
    $region4: #{pool_bn.2} parent=1 // loop_header_branch
      %16 = sbr.rel (%p14) target = $region8
    $region5: #{pool_bn.2} parent=1 // loop_body
      %s18 = ssub.s32 %s13, 1
      %s19 = ssub.s32 %s13, 2
      %s26 = sadd.s32 1, %s21
      %p27 = scmp.ge.s32.totalorder %s26, 4
      %s28 = scalar_select %p27, 0, %s26
      %s29 = sadd.s32 1, %s20
      %s30 = scalar_select %p27, %s29, %s20
      %p31 = scmp.ge.s32.totalorder %s30, 2
      %s32 = scalar_select %p31, 0, %s30
      %s33 = ssub.s32 %s20, %s32
      %s34 = ssub.s32 %s21, %s28
      %s35 = sor.u32 %s33, %s34
      %p36 = scmp.eq.s32.totalorder %s35, 0
      %s38 = sadd.s32 %s37, 1
      %s39 = scalar_select %p36, %s37, %s38
      %p42 = pneg %p36
      %p43 = scmp.eq.s32.totalorder %s13, 7
      %p44 = por %p42, %p43
      %p45 = scmp.ne.s32.totalorder %s37, %s40
      %p46 = scmp.eq.s32.totalorder %s13, 0
      %p47 = por %p45, %p46
      %p48 = scmp.ne.s32.totalorder %s37, %s40
      %p49 = scmp.eq.s32.totalorder %s18, 7
      %p50 = por %p48, %p49
      %p51 = scmp.ne.s32.totalorder %s40, %s41
      %p52 = scmp.eq.s32.totalorder %s18, 0
      %p53 = por %p51, %p52
      %p54 = scmp.ne.s32.totalorder %s40, %s41
      %p55 = scmp.eq.s32.totalorder %s19, 7
      %p56 = por %p54, %p55
      %p58 = scmp.ne.s32.totalorder %s41, %s57
      %p59 = scmp.eq.s32.totalorder %s19, 0
      %p60 = por %p58, %p59
      %s61 = ssub.s32 %s20, %s32
      %s62 = ssub.s32 %s21, %s28
      %s63 = sor.u32 %s61, %s62
      %p64 = scmp.eq.s32.totalorder %s63, 0
      %s66 = sadd.s32 %s65, 1
      %s67 = scalar_select %p64, %s65, %s66
      %p70 = pneg %p64
      %p71 = scmp.eq.s32.totalorder %s13, 7
      %p72 = por %p70, %p71
      %p73 = scmp.ne.s32.totalorder %s65, %s68
      %p74 = scmp.eq.s32.totalorder %s13, 0
      %p75 = por %p73, %p74
      %p76 = scmp.ne.s32.totalorder %s65, %s68
      %p77 = scmp.eq.s32.totalorder %s18, 7
      %p78 = por %p76, %p77
      %p79 = scmp.ne.s32.totalorder %s68, %s69
      %p80 = scmp.eq.s32.totalorder %s18, 0
      %p81 = por %p79, %p80
      %p82 = scmp.ne.s32.totalorder %s68, %s69
      %p83 = scmp.eq.s32.totalorder %s19, 7
      %p84 = por %p82, %p83
      %p86 = scmp.ne.s32.totalorder %s69, %s85
      %p87 = scmp.eq.s32.totalorder %s19, 0
      %p88 = por %p86, %p87
      %s89 = ssub.s32 %s20, %s32
      %s90 = ssub.s32 %s21, %s28
      %s91 = sor.u32 %s89, %s90
      %p92 = scmp.eq.s32.totalorder %s91, 0
      %s94 = sadd.s32 %s93, 1
      %s95 = scalar_select %p92, %s93, %s94
      %p98 = pneg %p92
      %p99 = scmp.eq.s32.totalorder %s13, 7
      %p100 = por %p98, %p99
      %p101 = scmp.ne.s32.totalorder %s93, %s96
      %p102 = scmp.eq.s32.totalorder %s13, 0
      %p103 = por %p101, %p102
      %p104 = scmp.ne.s32.totalorder %s93, %s96
      %p105 = scmp.eq.s32.totalorder %s18, 7
      %p106 = por %p104, %p105
      %p107 = scmp.ne.s32.totalorder %s96, %s97
      %p108 = scmp.eq.s32.totalorder %s18, 0
      %p109 = por %p107, %p108
      %p110 = scmp.ne.s32.totalorder %s96, %s97
      %p111 = scmp.eq.s32.totalorder %s19, 7
      %p112 = por %p110, %p111
      %p114 = scmp.ne.s32.totalorder %s97, %s113
      %p115 = scmp.eq.s32.totalorder %s19, 0
      %p116 = por %p114, %p115
      %s117 = ssub.s32 %s20, %s32
      %s118 = ssub.s32 %s21, %s28
      %s119 = sor.u32 %s117, %s118
      %p120 = scmp.eq.s32.totalorder %s119, 0
      %s122 = sadd.s32 %s121, 1
      %s123 = scalar_select %p120, %s121, %s122
      %p126 = pneg %p120
      %p127 = scmp.eq.s32.totalorder %s13, 7
      %p128 = por %p126, %p127
      %p129 = scmp.ne.s32.totalorder %s121, %s124
      %p130 = scmp.eq.s32.totalorder %s13, 0
      %p131 = por %p129, %p130
      %p132 = scmp.ne.s32.totalorder %s121, %s124
      %p133 = scmp.eq.s32.totalorder %s18, 7
      %p134 = por %p132, %p133
      %p135 = scmp.ne.s32.totalorder %s124, %s125
      %p136 = scmp.eq.s32.totalorder %s18, 0
      %p137 = por %p135, %p136
      %p138 = scmp.ne.s32.totalorder %s124, %s125
      %p139 = scmp.eq.s32.totalorder %s19, 7
      %p140 = por %p138, %p139
      %p142 = scmp.ne.s32.totalorder %s125, %s141
      %p143 = scmp.eq.s32.totalorder %s19, 0
      %p144 = por %p142, %p143
      %p145 = scmp.le.s32.totalorder 1, %s13
      %p146 = scmp.lt.s32.totalorder %s13, 9
      %p147 = pnand %p145, %p146
      %p148 = pneg %p147
      // Predicated region
      $region9: #{pool_bn.2} parent=5 // pred_check
        _
      $region10: #{pool_bn.2} parent=5 // pred_check_branch
        %150 = sbr.rel (%p147) target = $region12
      $region11: #{pool_bn.2} parent=5 // pred_region
        %s151 = ssub.s32 %s13, 1
      $region12: #{pool_bn.2} parent=5 // pred_fallthru
        _
      %p152 = scmp.lt.s32.totalorder %s13, 8
      // Predicated region
      $region13: #{pool_bn.2} parent=5 // pred_check
        %p153 = pneg %p152
      $region14: #{pool_bn.2} parent=5 // pred_check_branch
        %155 = sbr.rel (%p153) target = $region16
      $region15: #{pool_bn.2} parent=5 // pred_region
        // Predicated region
        $region17: #{pool_bn.2} parent=15 // pred_check
          %p156 = pneg %p47
        $region18: #{pool_bn.2} parent=15 // pred_check_branch
          %158 = sbr.rel (%p156) target = $region20
        $region19: #{pool_bn.2} parent=15 // pred_region
          %s159 = sand.u32 %s37, 1
          %s160 = scalar_lea.sflag [#allocation5], %s159
          %s161 = sand.u32 %s37, 1
          %s162 = smul.addr %s161, 16
          %s163 = scalar_lea.vmem [#allocation4], %s162
          %s165 = ssub.s32 256, 256
          %166 = vsyncadd %s160, %s165
          %s167 = smul.addr %s21, 2
          %s168 = smul.addr %s20, 8
          %s169 = sadd.s32 %s167, %s168
          %s170 = smul.addr %s169, 128
          %s171 = scalar_lea.hbm %s0, %s170
          %s172 = sshll.u32 %s163, 4
          %s173 = int_to_ptr.vmem [resolvable:$true] %s172
          %178 = dma.hbm_to_vmem [thread:$0]  %s171, 256, %s173, %s160, 128, 128, 8
        $region20: #{pool_bn.2} parent=15 // pred_fallthru
          _
      $region16: #{pool_bn.2} parent=5 // pred_fallthru
        _
      %p179 = scmp.le.s32.totalorder 1, %s13
      %p180 = scmp.lt.s32.totalorder %s13, 9
      %p181 = pnand %p179, %p180
      %p182 = pneg %p181
      // Predicated region
      $region21: #{pool_bn.2} parent=5 // pred_check
        _
      $region22: #{pool_bn.2} parent=5 // pred_check_branch
        %184 = sbr.rel (%p181) target = $region24
      $region23: #{pool_bn.2} parent=5 // pred_region
        %s185 = ssub.s32 %s13, 1
        %s186 = sand.u32 %s40, 1
        %s187 = scalar_lea.sflag [#allocation5], %s186
        %s188 = sand.u32 %s40, 1
        %s189 = smul.addr %s188, 16
        %s190 = scalar_lea.vmem [#allocation4], %s189
        // Predicated region
        $region25: #{pool_bn.2} parent=23 // pred_check
          %p191 = pneg %p53
        $region26: #{pool_bn.2} parent=23 // pred_check_branch
          %193 = sbr.rel (%p191) target = $region28
        $region27: #{pool_bn.2} parent=23 // pred_region
          %194 = dma.done %s187, 256
        $region28: #{pool_bn.2} parent=23 // pred_fallthru
          _
        %s195 = sand.u32 %s40, 1
        %s196 = scalar_lea.sflag [#allocation5], %s195
        %s197 = sand.u32 %s40, 1
        %s198 = smul.addr %s197, 16
        %s199 = scalar_lea.vmem [#allocation4], %s198
        %p200 = pneg %p53
        %p201 = pneg %p50
        %p202 = pneg %p81
        %p203 = pneg %p78
        %p204 = scmp.lt.s32.totalorder %s22, 1
        %s205 = scalar_select %p204, %s22, 1
        %p206 = scmp.lt.s32.totalorder %s23, 3
        %s207 = scalar_select %p206, %s23, 3
        %s208 = smul.addr %s207, 2
        %s209 = smul.addr %s205, 8
        %s210 = sadd.s32 %s208, %s209
        %s211 = smul.addr %s210, 8
        %s212 = scalar_lea.vmem %s1, %s211
        %p213 = pneg %p109
        %p214 = pneg %p106
        %p215 = scmp.lt.s32.totalorder %s22, 1
        %s216 = scalar_select %p215, %s22, 1
        %p217 = scmp.lt.s32.totalorder %s23, 3
        %s218 = scalar_select %p217, %s23, 3
        %s219 = smul.addr %s216, 4
        %s220 = sadd.s32 %s218, %s219
        %s221 = scalar_lea.vmem %s2, %s220
        %p222 = pneg %p137
        %p223 = pneg %p134
        %p224 = scmp.lt.s32.totalorder %s22, 1
        %s225 = scalar_select %p224, %s22, 1
        %p226 = scmp.lt.s32.totalorder %s23, 3
        %s227 = scalar_select %p226, %s23, 3
        %s228 = smul.addr %s225, 4
        %s229 = sadd.s32 %s227, %s228
        %s230 = scalar_lea.vmem %s3, %s229
        %p231 = scmp.lt.s32.totalorder %s22, 1
        %s232 = scalar_select %p231, %s22, 1
        %p233 = scmp.lt.s32.totalorder %s23, 3
        %s234 = scalar_select %p233, %s23, 3
        %s235 = smul.addr %s234, 2
        %s236 = smul.addr %s232, 8
        %s237 = sadd.s32 %s235, %s236
        %s238 = smul.addr %s237, 8
        %s239 = scalar_lea.vmem %s1, %s238
        %p240 = scmp.lt.s32.totalorder %s22, 1
        %s241 = scalar_select %p240, %s22, 1
        %p242 = scmp.lt.s32.totalorder %s23, 3
        %s243 = scalar_select %p242, %s23, 3
        %s244 = smul.addr %s241, 4
        %s245 = sadd.s32 %s243, %s244
        %s246 = scalar_lea.vmem %s2, %s245
        %p247 = scmp.lt.s32.totalorder %s22, 1
        %s248 = scalar_select %p247, %s22, 1
        %p249 = scmp.lt.s32.totalorder %s23, 3
        %s250 = scalar_select %p249, %s23, 3
        %s251 = smul.addr %s248, 4
        %s252 = sadd.s32 %s250, %s251
        %s253 = scalar_lea.vmem %s3, %s252
        %vm254 = vcmask 7168
        %255 = vst.msk [vmem:[#allocation2] sm:$0xff] %vm254, -inf
        %256 = vst.msk [vmem:[#allocation2 + $0x8] sm:$0xff] %vm254, -inf
        %vm257 = vcmask 146568
        %258 = vst.msk [vmem:[#allocation2] sm:$0xff] %vm257, -inf
        %259 = vst.msk [vmem:[#allocation2 + $0x8] sm:$0xff] %vm257, -inf
        %v260 = vld [vmem:[%s190] sm:$0xff]
        %v261 = vld [vmem:[%s190 + $0x8] sm:$0xff]
        %264 = vrot.lane.b32.xlu0 %v260, 1
        %v265 = vpop.permute.xlu0 %264
        %266 = vrot.lane.b32.xlu0 %v261, 1
        %v267 = vpop.permute.xlu0 %266
        %vm270 = vcmask 138248
        %271 = vst.msk [vmem:[#allocation2] sm:$0xff] %vm270, %v265
        %272 = vst.msk [vmem:[#allocation2 + $0x8] sm:$0xff] %vm270, %v267
        %v273 = vld [vmem:[#allocation2] sm:$0xff]
        %v274 = vld [vmem:[#allocation2 + $0x8] sm:$0xff]
        %277 = vrot.lane.b32.xlu0 %v273, 127
        %v278 = vpop.permute.xlu0 %277
        %279 = vrot.lane.b32.xlu0 %v274, 127
        %v280 = vpop.permute.xlu0 %279
        %v283 = vmax.f32 %v273, %v278
        %v284 = vmax.f32 %v274, %v280
        %285 = vrot.lane.b32.xlu0 %v273, 126
        %v286 = vpop.permute.xlu0 %285
        %287 = vrot.lane.b32.xlu0 %v274, 126
        %v288 = vpop.permute.xlu0 %287
        %v291 = vmax.f32 %v283, %v286
        %v292 = vmax.f32 %v284, %v288
        %vm293 = vcmask 122880
        %294 = vst.msk [vmem:[#allocation3] sm:$0x1] %vm293, -inf
        %295 = vst.msk [vmem:[#allocation3 + $0x11] sm:$0x1] %vm293, -inf
        %vm296 = vcmask 130048
        %297 = vst.msk [vmem:[#allocation3 + $0x1] sm:$0xff] %vm296, %v291
        %298 = vst.msk [vmem:[#allocation3 + $0x9] sm:$0xff] %vm296, %v292
        %v299 = vld [vmem:[#allocation3] sm:$0xff]
        %v300 = vld [vmem:[#allocation3 + $0x8] sm:$0xff]
        %v301 = vld [vmem:[#allocation3 + $0x1] sm:$0xff]
        %v302 = vld [vmem:[#allocation3 + $0x9] sm:$0xff]
        %v303 = vmax.f32 %v299, %v301
        %v304 = vmax.f32 %v300, %v302
        %v305 = vld [vmem:[#allocation3 + $0x2] sm:$0xff]
        %v306 = vld [vmem:[#allocation3 + $0xa] sm:$0xff]
        %v307 = vmax.f32 %v303, %v305
        %v308 = vmax.f32 %v304, %v306
        %309 = vst.msk [vmem:[%s239] sm:$0xff] %vm296, %v307
        %310 = vst.msk [vmem:[%s239 + $0x8] sm:$0xff] %vm296, %v308
        %v311 = vsel %vm296, %v307, 0.0
        %v312 = vsel %vm296, %v308, 0.0
        %v313 = vadd.f32 %v311, %v312
        %v314 = vrot.slane %v313, 4
        %v315 = vadd.f32 %v313, %v314
        %v316 = vrot.slane %v315, 2
        %v317 = vadd.f32 %v315, %v316
        %v318 = vrot.slane %v317, 1
        %v319 = vadd.f32 %v317, %v318
        %v320 = vsel %vm296, %v319, 0.0
        %321 = vadd.xlane.f32.xlu0 %v320
        %v322 = vpop.xlane.xlu0 %321
        %v323 = vmul.f32 %v322, 0.00390625
        %v324 = vsub.f32 %v307, %v323
        %v325 = vsub.f32 %v308, %v323
        %v326 = vmul.f32 %v324, %v324
        %v327 = vmul.f32 %v325, %v325
        %v328 = vsel %vm296, %v326, 0.0
        %v329 = vsel %vm296, %v327, 0.0
        %v330 = vadd.f32 %v328, %v329
        %v331 = vrot.slane %v330, 4
        %v332 = vadd.f32 %v330, %v331
        %v333 = vrot.slane %v332, 2
        %v334 = vadd.f32 %v332, %v333
        %v335 = vrot.slane %v334, 1
        %v336 = vadd.f32 %v334, %v335
        %v337 = vsel %vm296, %v336, 0.0
        %338 = vadd.xlane.f32.xlu0 %v337
        %v339 = vpop.xlane.xlu0 %338
        %vm340 = vcmask 0
        %341 = vst.msk [vmem:[%s246] sm:$0x1] %vm340, %v322
        %342 = vst.msk [vmem:[%s253] sm:$0x1] %vm340, %v339
        %p343 = scmp.lt.s32.totalorder %s22, 1
        %s344 = scalar_select %p343, %s22, 1
        %p345 = scmp.lt.s32.totalorder %s23, 3
        %s346 = scalar_select %p345, %s23, 3
        %s347 = smul.addr %s346, 2
        %s348 = smul.addr %s344, 8
        %s349 = sadd.s32 %s347, %s348
        %s350 = smul.addr %s349, 8
        %s351 = scalar_lea.vmem %s1, %s350
        %p352 = scmp.lt.s32.totalorder %s22, 1
        %s353 = scalar_select %p352, %s22, 1
        %p354 = scmp.lt.s32.totalorder %s23, 3
        %s355 = scalar_select %p354, %s23, 3
        %s356 = smul.addr %s353, 4
        %s357 = sadd.s32 %s355, %s356
        %s358 = scalar_lea.vmem %s2, %s357
        %p359 = scmp.lt.s32.totalorder %s22, 1
        %s360 = scalar_select %p359, %s22, 1
        %p361 = scmp.lt.s32.totalorder %s23, 3
        %s362 = scalar_select %p361, %s23, 3
        %s363 = smul.addr %s360, 4
        %s364 = sadd.s32 %s362, %s363
        %s365 = scalar_lea.vmem %s3, %s364
        // Predicated region
        $region29: #{pool_bn.2} parent=23 // pred_check
          %p366 = pneg %p78
        $region30: #{pool_bn.2} parent=23 // pred_check_branch
          %368 = sbr.rel (%p366) target = $region32
        $region31: #{pool_bn.2} parent=23 // pred_region
          _
        $region32: #{pool_bn.2} parent=23 // pred_fallthru
          _
        // Predicated region
        $region33: #{pool_bn.2} parent=23 // pred_check
          %p369 = pneg %p106
        $region34: #{pool_bn.2} parent=23 // pred_check_branch
          %371 = sbr.rel (%p369) target = $region36
        $region35: #{pool_bn.2} parent=23 // pred_region
          _
        $region36: #{pool_bn.2} parent=23 // pred_fallthru
          _
        // Predicated region
        $region37: #{pool_bn.2} parent=23 // pred_check
          %p372 = pneg %p134
        $region38: #{pool_bn.2} parent=23 // pred_check_branch
          %374 = sbr.rel (%p372) target = $region40
        $region39: #{pool_bn.2} parent=23 // pred_region
          _
        $region40: #{pool_bn.2} parent=23 // pred_fallthru
          _
      $region24: #{pool_bn.2} parent=5 // pred_fallthru
        _
      %p375 = scmp.le.s32.totalorder 2, %s13
      // Predicated region
      $region41: #{pool_bn.2} parent=5 // pred_check
        %p376 = pneg %p375
      $region42: #{pool_bn.2} parent=5 // pred_check_branch
        %378 = sbr.rel (%p376) target = $region44
      $region43: #{pool_bn.2} parent=5 // pred_region
        %s379 = ssub.s32 %s13, 2
        // Predicated region
        $region45: #{pool_bn.2} parent=43 // pred_check
          %p380 = pneg %p84
        $region46: #{pool_bn.2} parent=43 // pred_check_branch
          %382 = sbr.rel (%p380) target = $region48
        $region47: #{pool_bn.2} parent=43 // pred_region
          %p383 = scmp.lt.s32.totalorder %s24, 1
          %s384 = scalar_select %p383, %s24, 1
          %p385 = scmp.lt.s32.totalorder %s25, 3
          %s386 = scalar_select %p385, %s25, 3
          %s387 = smul.addr %s386, 2
          %s388 = smul.addr %s384, 8
          %s389 = sadd.s32 %s387, %s388
          %s390 = smul.addr %s389, 8
          %s391 = scalar_lea.vmem %s1, %s390
        $region48: #{pool_bn.2} parent=43 // pred_fallthru
          _
        // Predicated region
        $region49: #{pool_bn.2} parent=43 // pred_check
          %p392 = pneg %p112
        $region50: #{pool_bn.2} parent=43 // pred_check_branch
          %394 = sbr.rel (%p392) target = $region52
        $region51: #{pool_bn.2} parent=43 // pred_region
          %p395 = scmp.lt.s32.totalorder %s24, 1
          %s396 = scalar_select %p395, %s24, 1
          %p397 = scmp.lt.s32.totalorder %s25, 3
          %s398 = scalar_select %p397, %s25, 3
          %s399 = smul.addr %s396, 4
          %s400 = sadd.s32 %s398, %s399
          %s401 = scalar_lea.vmem %s2, %s400
        $region52: #{pool_bn.2} parent=43 // pred_fallthru
          _
        // Predicated region
        $region53: #{pool_bn.2} parent=43 // pred_check
          %p402 = pneg %p140
        $region54: #{pool_bn.2} parent=43 // pred_check_branch
          %404 = sbr.rel (%p402) target = $region56
        $region55: #{pool_bn.2} parent=43 // pred_region
          %p405 = scmp.lt.s32.totalorder %s24, 1
          %s406 = scalar_select %p405, %s24, 1
          %p407 = scmp.lt.s32.totalorder %s25, 3
          %s408 = scalar_select %p407, %s25, 3
          %s409 = smul.addr %s406, 4
          %s410 = sadd.s32 %s408, %s409
          %s411 = scalar_lea.vmem %s3, %s410
        $region56: #{pool_bn.2} parent=43 // pred_fallthru
          _
      $region44: #{pool_bn.2} parent=5 // pred_fallthru
        _
    $region6: #{pool_bn.2} parent=1 // loop_footer
      %s17 = sadd.s32 1, %s13
    $region7: #{pool_bn.2} parent=1 // loop_footer_branch
      %12 = sbr.rel target = $region3
    $region8: #{pool_bn.2} parent=1 // loop_exit
      _
    %412 = vsyncpa [#allocation5], 1
    %s413 = scalar_lea.sflag [#allocation5], 1
    %414 = vsyncpa %s413, 1

// kernel: pool_bn.3
$region0: #{pool_bn.3}
  #allocation0 [shape = 'u32[]', space=smem, size = 0x4, offset = 0x4, fixed_abs, tag = 'smem constant byte address 0x4 - core index']
  #allocation1 [shape = 'u32[144,128]{1,0:T(1,128)}', space=vmem, size = 0x12000, scoped, tag = 'internal scratch']
  %s0 = inlined_call_operand.vmem [shape: f32[8,256], index: 0, kind: input, shape index: {}, may-alias: {0,3}]
  %s1 = inlined_call_operand.vmem [shape: f32[8,1], index: 1, kind: input, shape index: {}]
  %s2 = inlined_call_operand.vmem [shape: f32[8,1], index: 2, kind: input, shape index: {}]
  %s3 = inlined_call_operand.vmem [shape: f32[8,256], index: 3, kind: output, shape index: {}, may-alias: {0,3}]
  %s4 = sld [smem:[#allocation0]]
  $region22: #{pool_bn.3} parent=0
    _
  %s6 = ssub.s32 1, %s4
  %s7 = scalar_select 0, %s6, %s4
  // Predicated region
  $region2: #{pool_bn.3} parent=0 // pred_check
    _
  $region3: #{pool_bn.3} parent=0 // pred_check_branch
    %9 = sbr.rel (0) target = $region5
  $region4: #{pool_bn.3} parent=0 // pred_region
    _
  $region5: #{pool_bn.3} parent=0 // pred_fallthru
    _
  // Predicated region
  $region6: #{pool_bn.3} parent=0 // pred_check
    _
  $region7: #{pool_bn.3} parent=0 // pred_check_branch
    %11 = sbr.rel (0) target = $region9
  $region8: #{pool_bn.3} parent=0 // pred_region
    _
  $region9: #{pool_bn.3} parent=0 // pred_fallthru
    _
  // Predicated region
  $region10: #{pool_bn.3} parent=0 // pred_check
    _
  $region11: #{pool_bn.3} parent=0 // pred_check_branch
    %13 = sbr.rel (0) target = $region13
  $region12: #{pool_bn.3} parent=0 // pred_region
    _
  $region13: #{pool_bn.3} parent=0 // pred_fallthru
    _
  %v14 = vld [vmem:[%s0] sm:$0xff]
  %v15 = vld [vmem:[%s0 + $0x8] sm:$0xff]
  %v16 = vld [vmem:[%s1] sm:$0xff]
  %18 = vset.pattern.permute.xlu0 0
  %19 = vperm.xlu0 %18, %v16
  %v20 = vpop.permute.xlu0 %19
  %v22 = vmul.f32 %v14, %v20
  %v23 = vmul.f32 %v15, %v20
  %v24 = vld [vmem:[%s2] sm:$0xff]
  %26 = vset.pattern.permute.xlu0 0
  %27 = vperm.xlu0 %26, %v24
  %v28 = vpop.permute.xlu0 %27
  %v30 = vadd.f32 %v22, %v28
  %v31 = vadd.f32 %v23, %v28
  %32 = vst [vmem:[%s3] sm:$0xff] %v30
  %33 = vst [vmem:[%s3 + $0x8] sm:$0xff] %v31
  // Predicated region
  $region14: #{pool_bn.3} parent=0 // pred_check
    _
  $region15: #{pool_bn.3} parent=0 // pred_check_branch
    %35 = sbr.rel (0) target = $region17
  $region16: #{pool_bn.3} parent=0 // pred_region
    _
  $region17: #{pool_bn.3} parent=0 // pred_fallthru
    _
  // Predicated region
  $region18: #{pool_bn.3} parent=0 // pred_check
    _
  $region19: #{pool_bn.3} parent=0 // pred_check_branch
    %37 = sbr.rel (0) target = $region21
  $region20: #{pool_bn.3} parent=0 // pred_region
    _
  $region21: #{pool_bn.3} parent=0 // pred_fallthru
    _

</llo_original>
